<compile_context>
chip_gen: v7x
topology: tpu7x:2x2x1
jax: 0.10.0
libtpu: 0.0.40
codegen_flags: <defaults>
</compile_context>

<pallas_src>
import jax
import jax.numpy as jnp
from jax.experimental import pallas as pl
from jax.experimental.pallas import tpu as pltpu

EPS = 1e-5

# ----------------------------------------------------------------------------
# One-shot hardware probes (cached; executed eagerly even under an outer jit
# trace thanks to jax.ensure_compile_time_eval, and warmed up at import time).
# ----------------------------------------------------------------------------
_ROLL_IS_JNP = None          # does pltpu.roll shift toward higher indices?
_RESIDENT_SPEC_OK = None     # is BlockSpec(memory_space=VMEM) + grid accepted?


def _roll_matches_jnp_convention():
    """Probe pltpu.roll's shift direction (jnp.roll convention or not)."""
    global _ROLL_IS_JNP
    if _ROLL_IS_JNP is None:
        def probe_kernel(x_ref, o_ref):
            o_ref[...] = pltpu.roll(x_ref[...], 1, axis=1)

        with jax.ensure_compile_time_eval():
            vmem = pl.BlockSpec(memory_space=pltpu.MemorySpace.VMEM)
            xprobe = jnp.broadcast_to(jnp.arange(128, dtype=jnp.float32),
                                      (8, 128))
            r = pl.pallas_call(
                probe_kernel,
                out_shape=jax.ShapeDtypeStruct((8, 128), jnp.float32),
                in_specs=[vmem],
                out_specs=vmem,
            )(xprobe)
            # jnp.roll(x, 1)[0] == x[-1] == 127; the other convention gives 1.
            _ROLL_IS_JNP = bool(float(jax.device_get(r)[0, 0]) > 64.0)
    return _ROLL_IS_JNP


def _resident_vmem_spec_ok():
    """Probe whether a whole-array memory_space=VMEM input is accepted inside a
    gridded pallas_call (single-buffered resident operand).  If not, the
    wrapper falls back to a constant-index (double-buffered) BlockSpec."""
    global _RESIDENT_SPEC_OK
    if _RESIDENT_SPEC_OK is None:
        def probe_kernel(x_ref, o_ref):
            o_ref[...] = x_ref[...] + 1.0

        try:
            with jax.ensure_compile_time_eval():
                r = pl.pallas_call(
                    probe_kernel,
                    out_shape=jax.ShapeDtypeStruct((8, 128), jnp.float32),
                    grid=(2,),
                    in_specs=[pl.BlockSpec(memory_space=pltpu.MemorySpace.VMEM)],
                    out_specs=pl.BlockSpec((8, 128), lambda i: (0, 0)),
                )(jnp.zeros((8, 128), jnp.float32))
                jax.block_until_ready(r)
            _RESIDENT_SPEC_OK = True
        except Exception:
            _RESIDENT_SPEC_OK = False
    return _RESIDENT_SPEC_OK


def _tpu_info():
    """Returns (lowercased device kind, VMEM capacity in bytes)."""
    kind = ""
    try:
        kind = jax.devices()[0].device_kind.lower()
    except Exception:
        pass
    vmem_cap = None
    try:
        vmem_cap = int(pltpu.get_tpu_info().vmem_capacity_bytes)
    except Exception:
        pass
    if vmem_cap is None:
        # v4/v5/v6 have 128 MiB VMEM per TensorCore; v7x (and unknown) -> 64 MiB.
        big = any(g in kind for g in ("v4", "v5", "v6"))
        vmem_cap = (128 << 20) if big else (64 << 20)
    return kind, vmem_cap


def _pick_channel_block(Cp, kind):
    """Default output-channel block: fill the MXU M dimension; keep two blocks
    on v7x so the "parallel" grid axis can span both TensorCores."""
    if "v7" in kind and Cp >= 16:
        cand, cap = Cp // 2, 256
    elif "v5" in kind:
        cand, cap = Cp, 128
    else:                                   # v6e / unknown
        cand, cap = Cp, 256
    if cand > cap:
        cand = cap
        while Cp % cand:                    # Cp is a multiple of 8 -> terminates
            cand -= 8
    return max(8, cand)


# ----------------------------------------------------------------------------
# Kernel
# ----------------------------------------------------------------------------
def _make_stage_kernel(H, W, NHW, roll_is_jnp, with_shortcut, mxu_dtype):
    """Kernel computing, for one lane-dense block of output channels:
         relu(bn(conv3x3(src)) [+ shortcut])  ->  out  (cblk, N*H*W)."""

    def conv_bn(src_ref, masks_ref, w_ref, gb_ref):
        src = src_ref[...]                                  # (Cp, NHW) f32
        acc = None
        tap = 0
        for ky in range(3):
            dy = ky - 1
            for kx in range(3):
                dx = kx - 1
                off = dy * W + dx                           # flat tap offset
                if off == 0:
                    shifted = src
                else:
                    amount = (-off) % NHW if roll_is_jnp else off % NHW
                    shifted = pltpu.roll(src, amount, axis=1)
                # zero positions whose neighbour lies outside the image
                masked = shifted * masks_ref[pl.ds(tap, 1), :]
                # one accumulating MXU matmul per tap (bf16 operands on
                # v6e/v7x, f32 accumulation)
                part = jnp.dot(w_ref[tap], masked.astype(mxu_dtype),
                               preferred_element_type=jnp.float32)
                acc = part if acc is None else acc + part
                tap += 1
        # Training-mode BatchNorm2d over (N, H, W) == the lane axis, fused into
        # one scale/shift FMA.  (Conv bias omitted: cancels exactly here.)
        mean = jnp.mean(acc, axis=1, keepdims=True)
        var = jnp.mean(jnp.square(acc - mean), axis=1, keepdims=True)
        scale = gb_ref[:, 0:1] * jax.lax.rsqrt(var + EPS)
        shift = gb_ref[:, 1:2] - mean * scale
        return acc * scale + shift

    if with_shortcut:
        def kernel(src_ref, masks_ref, w_ref, gb_ref, xs_ref, out_ref):
            y = conv_bn(src_ref, masks_ref, w_ref, gb_ref)
            y = y + xs_ref[...].astype(jnp.float32)
            out_ref[...] = jnp.maximum(y, 0.0).astype(out_ref.dtype)
    else:
        def kernel(src_ref, masks_ref, w_ref, gb_ref, out_ref):
            y = conv_bn(src_ref, masks_ref, w_ref, gb_ref)
            out_ref[...] = jnp.maximum(y, 0.0).astype(out_ref.dtype)
    return kernel


# ----------------------------------------------------------------------------
# Wrapper
# ----------------------------------------------------------------------------
def basic_block_forward(x_nchw, params, *, channel_block=None, compute_dtype=None):
    """x_nchw: (N, Cin, H, W) float32 (PyTorch layout).  Returns NCHW output."""
    N, Cin, H, W = x_nchw.shape
    Cout = params["w1"].shape[-1]
    assert params["w1"].shape == (3, 3, Cin, Cout)
    assert Cin == Cout, "identity shortcut requires in_filters == out_filters"

    f32 = jnp.float32
    NHW = N * H * W
    Cp = max(8, ((Cout + 7) // 8) * 8)          # pad channels to sublane tile

    kind, vmem_cap = _tpu_info()
    if compute_dtype is None:
        # bf16 MXU operands (f32 accumulation) on v6e/v7x; f32 elsewhere.
        compute_dtype = jnp.bfloat16 if ("v6" in kind or "v7" in kind) else f32
    mxu_dtype = compute_dtype

    cblk = (channel_block if channel_block is not None
            else _pick_channel_block(Cp, kind))
    assert Cp % cblk == 0, f"channel_block {cblk} must divide padded C {Cp}"
    n_cb = Cp // cblk

    roll_is_jnp = _roll_matches_jnp_convention()

    # ---- wrapper-side layout plumbing (everything lane-dense for the kernels)
    # Channels-first 2D activation: (Cp, N*H*W); spatial on the 128-lane axis.
    x2d = jnp.transpose(x_nchw.astype(f32), (1, 0, 2, 3)).reshape(Cin, NHW)
    x2d = jnp.pad(x2d, ((0, Cp - Cin), (0, 0)))

    # 3x3 tap validity masks, hoisted out of the kernel: mask[t, p] == 1 iff the
    # neighbour of flattened position p for tap t lies inside the same image.
    pos = jnp.arange(NHW, dtype=jnp.int32)
    xi = pos % W
    yi = (pos // W) % H
    rows = []
    for ky in range(3):
        dy = ky - 1
        for kx in range(3):
            dx = kx - 1
            rows.append((xi + dx >= 0) & (xi + dx < W) &
                        (yi + dy >= 0) & (yi + dy < H))
    masks = jnp.stack(rows).astype(f32)                 # (9, NHW)
    masks = jnp.pad(masks, ((0, 16 - 9), (0, 0)))       # sublane-aligned (16, NHW)

    def fold_w(w):
        # HWIO (3,3,ci,co) -> zero-pad channels -> (n_cb, 9, cblk, Cp):
        # per output-channel block, one (cblk, Cp) weight slab per 3x3 tap.
        ci, co = w.shape[2], w.shape[3]
        wp = jnp.pad(w.astype(f32), ((0, 0), (0, 0), (0, Cp - ci), (0, Cp - co)))
        wr = jnp.transpose(wp.reshape(9, Cp, Cp), (2, 0, 1))   # (co, tap, ci)
        wr = wr.reshape(n_cb, cblk, 9, Cp)
        return jnp.transpose(wr, (0, 2, 1, 3)).astype(mxu_dtype)

    def fold_bn(g, b):
        gp = jnp.pad(g.reshape(-1).astype(f32), (0, Cp - Cout), constant_values=1.0)
        bp = jnp.pad(b.reshape(-1).astype(f32), (0, Cp - Cout), constant_values=0.0)
        return jnp.stack([gp, bp], axis=-1).reshape(n_cb, cblk, 2)

    w1f, w2f = fold_w(params["w1"]), fold_w(params["w2"])
    gb1 = fold_bn(params["g1"], params["be1"])
    gb2 = fold_bn(params["g2"], params["be2"])
    # NOTE: conv biases b1/b2 are intentionally unused (exact cancellation
    # under training-mode BatchNorm).

    xs3 = x2d.reshape(n_cb, cblk, NHW)      # identity-shortcut channel blocks

    # ---- generation-aware VMEM budget: resident source + masks + roll/mask
    # temporaries + pipelined weight / BN / shortcut / output blocks.
    wb = jnp.dtype(mxu_dtype).itemsize
    est_bytes = (NHW * 4 * (5 * Cp + 16 + 8 * cblk)
                 + 2 * 9 * cblk * Cp * wb)
    cap = int(vmem_cap * (0.72 if vmem_cap <= (80 << 20) else 0.78))
    vmem_limit = int(min(cap, max(32 << 20, int(1.5 * est_bytes))))
    cparams = pltpu.CompilerParams(
        dimension_semantics=("parallel",),   # channel blocks -> both v7x TCs
        vmem_limit_bytes=vmem_limit)

    # ---- BlockSpecs.  src + masks stay whole-array VMEM resident (single
    # buffer); weights / BN / shortcut / output blocks are pipelined per step.
    if _resident_vmem_spec_ok():
        src_spec = pl.BlockSpec(memory_space=pltpu.MemorySpace.VMEM)
        mask_spec = pl.BlockSpec(memory_space=pltpu.MemorySpace.VMEM)
    else:  # fallback: constant-index blocks (double-buffered, still correct)
        src_spec = pl.BlockSpec((Cp, NHW), lambda c: (0, 0))
        mask_spec = pl.BlockSpec((16, NHW), lambda c: (0, 0))
    w_spec = pl.BlockSpec((None, 9, cblk, Cp), lambda c: (c, 0, 0, 0))
    gb_spec = pl.BlockSpec((None, cblk, 2), lambda c: (c, 0, 0))
    act_spec = pl.BlockSpec((None, cblk, NHW), lambda c: (c, 0, 0))
    out_shape = jax.ShapeDtypeStruct((n_cb, cblk, NHW), f32)

    # Stage 1: y1 = relu(bn1(conv1(x)))      (grid over output-channel blocks)
    y1 = pl.pallas_call(
        _make_stage_kernel(H, W, NHW, roll_is_jnp, False, mxu_dtype),
        out_shape=out_shape,
        grid=(n_cb,),
        in_specs=[src_spec, mask_spec, w_spec, gb_spec],
        out_specs=act_spec,
        compiler_params=cparams,
    )(x2d, masks, w1f, gb1).reshape(Cp, NHW)

    # Stage 2: out = relu(bn2(conv2(y1)) + x)
    out3 = pl.pallas_call(
        _make_stage_kernel(H, W, NHW, roll_is_jnp, True, mxu_dtype),
        out_shape=out_shape,
        grid=(n_cb,),
        in_specs=[src_spec, mask_spec, w_spec, gb_spec, act_spec],
        out_specs=act_spec,
        compiler_params=cparams,
    )(y1, masks, w2f, gb2, xs3)

    out2d = out3.reshape(Cp, NHW)[:Cout]
    return jnp.transpose(out2d.reshape(Cout, N, H, W), (1, 0, 2, 3))


# Warm the probes at import time (outside any jit trace); retried lazily (and
# still eagerly, via ensure_compile_time_eval) if the backend is not ready.
try:
    _roll_matches_jnp_convention()
    _resident_vmem_spec_ok()
except Exception:
    pass


# ----------------------------------------------------------------------------
# Pure-JAX reference + test harness
# ----------------------------------------------------------------------------
def _reference_forward(x_nchw, p):
    """Matches the PyTorch module (training-mode BatchNorm)."""
    x = jnp.transpose(x_nchw, (0, 2, 3, 1))

    def conv(x, w, b):
        y = jax.lax.conv_general_dilated(
            x, w, window_strides=(1, 1), padding=((1, 1), (1, 1)),
            dimension_numbers=("NHWC", "HWIO", "NHWC"),
            precision=jax.lax.Precision.HIGHEST)
        return y + b.reshape(1, 1, 1, -1)

    def bn(x, g, b):
        mean = x.mean(axis=(0, 1, 2), keepdims=True)
        var = ((x - mean) ** 2).mean(axis=(0, 1, 2), keepdims=True)
        return (x - mean) * jax.lax.rsqrt(var + EPS) * g.reshape(1, 1, 1, -1) \
            + b.reshape(1, 1, 1, -1)

    out = jax.nn.relu(bn(conv(x, p["w1"], p["b1"]), p["g1"], p["be1"]))
    out = bn(conv(out, p["w2"], p["b2"]), p["g2"], p["be2"])
    out = jax.nn.relu(out + x)
    return jnp.transpose(out, (0, 3, 1, 2))


def _init_params(key, cin, cout):
    ks = jax.random.split(key, 8)
    return {
        "w1": 0.2 * jax.random.normal(ks[0], (3, 3, cin, cout), jnp.float32),
        "b1": 0.05 * jax.random.normal(ks[1], (1, cout), jnp.float32),
        "g1": 1.0 + 0.1 * jax.random.normal(ks[2], (1, cout), jnp.float32),
        "be1": 0.05 * jax.random.normal(ks[3], (1, cout), jnp.float32),
        "w2": 0.2 * jax.random.normal(ks[4], (3, 3, cout, cout), jnp.float32),
        "b2": 0.05 * jax.random.normal(ks[5], (1, cout), jnp.float32),
        "g2": 1.0 + 0.1 * jax.random.normal(ks[6], (1, cout), jnp.float32),
        "be2": 0.05 * jax.random.normal(ks[7], (1, cout), jnp.float32),
    }


if __name__ == "__main__":
    key = jax.random.PRNGKey(0)
    kx, kp = jax.random.split(key)

    N, C, H, W = 2, 4, 16, 16                 # in_filters = out_filters = 4
    x = jax.random.normal(kx, (N, C, H, W), jnp.float32)
    params = _init_params(kp, C, C)
    ref = jax.block_until_ready(_reference_forward(x, params))

    # 1) f32 MXU operands: must match the f32 reference tightly.
    out = jax.block_until_ready(
        basic_block_forward(x, params, compute_dtype=jnp.float32))
    assert out.shape == (N, C, H, W)
    err = float(jnp.max(jnp.abs(out - ref)))
    assert jnp.allclose(out, ref, atol=1e-3, rtol=1e-3), f"f32 max abs err {err}"

    # 2) Generation-default path (bf16 MXU operands on v6e/v7x) with an
    #    explicit 2-step channel grid, at a bf16-appropriate tolerance.
    out_fast = jax.block_until_ready(
        basic_block_forward(x, params, channel_block=4))
    err_fast = float(jnp.max(jnp.abs(out_fast - ref)))
    assert jnp.allclose(out_fast, ref, atol=5e-2, rtol=5e-2), \
        f"fast-path max abs err {err_fast}"

    print("KERNEL_OK")
</pallas_src>

<mosaic_0001>
module attributes {stable_mosaic.version = 11 : i64} {
  func.func @probe_kernel(%arg0: memref<8x128xf32, #tpu.memory_space<vmem>>, %arg1: memref<8x128xf32, #tpu.memory_space<vmem>>) attributes {dimension_semantics = [], scalar_prefetch = 0 : i64, scratch_operands = 0 : i64, tpu.core_type = #tpu.core_type<tc>} {
    %c0 = arith.constant 0 : index
    %c0_0 = arith.constant 0 : index
    %0 = vector.load %arg0[%c0, %c0_0] : memref<8x128xf32, #tpu.memory_space<vmem>>, vector<8x128xf32>
    %c1_i32 = arith.constant 1 : i32
    %1 = tpu.dynamic_rotate %0 by %c1_i32 dim 1 : vector<8x128xf32>, i32 -> vector<8x128xf32>
    %c0_1 = arith.constant 0 : index
    %c0_2 = arith.constant 0 : index
    %2 = vector.load %arg1[%c0_1, %c0_2] : memref<8x128xf32, #tpu.memory_space<vmem>>, vector<8x128xf32>
    tpu.vector_store %arg1[%c0_1, %c0_2], %1 {strides = array<i32>} : memref<8x128xf32, #tpu.memory_space<vmem>>, vector<8x128xf32>,
    return
  }
}

module attributes {stable_mosaic.version = 11 : i64} {
  func.func @probe_kernel(%arg0: memref<8x128xf32, #tpu.memory_space<vmem>>, %arg1: memref<8x128xf32, #tpu.memory_space<vmem>>) attributes {dimension_semantics = [], scalar_prefetch = 0 : i64, scratch_operands = 0 : i64, tpu.core_type = #tpu.core_type<tc>} {
    %c0 = arith.constant 0 : index
    %c0_0 = arith.constant 0 : index
    %0 = vector.load %arg0[%c0, %c0_0] : memref<8x128xf32, #tpu.memory_space<vmem>>, vector<8x128xf32>
    %c1_i32 = arith.constant 1 : i32
    %1 = tpu.dynamic_rotate %0 by %c1_i32 dim 1 : vector<8x128xf32>, i32 -> vector<8x128xf32>
    %c0_1 = arith.constant 0 : index
    %c0_2 = arith.constant 0 : index
    %2 = vector.load %arg1[%c0_1, %c0_2] : memref<8x128xf32, #tpu.memory_space<vmem>>, vector<8x128xf32>
    tpu.vector_store %arg1[%c0_1, %c0_2], %1 {strides = array<i32>} : memref<8x128xf32, #tpu.memory_space<vmem>>, vector<8x128xf32>,
    return
  }
}

</mosaic_0001>

<llo_original>
// kernel: tpu_custom_call.1
$region0: #{tpu_custom_call.1}
  #allocation0 [shape = 'u32[]', space=smem, size = 0x4, offset = 0x4, fixed_abs, tag = 'smem constant byte address 0x4 - core index']
  #allocation1 [shape = 'u32[144,128]{1,0:T(1,128)}', space=vmem, size = 0x12000, scoped, tag = 'internal scratch']
  %s0 = inlined_call_operand.hbm [shape: f32[8,128], index: 0, kind: input, shape index: {}]
  %s1 = inlined_call_operand.hbm [shape: f32[8,128], index: 1, kind: output, shape index: {}]
  %s2 = sld [smem:[#allocation0]]
  $region18: #{tpu_custom_call.1} parent=0
    _
  %s4 = ssub.s32 1, %s2
  %s5 = scalar_select 0, %s4, %s2
  $region1: #{tpu_custom_call.1} parent=0
    #allocation2 [shape = 'u8[4096]{0}', space=vmem, size = 0x1000, scoped, tag = 'input window, operand 0, single buffered']
    #allocation3 [shape = 's32[1]{0}', space=sflag, size = 0x4, scoped, tag = 'scoped memory for tpu_custom_call.1']
    #allocation4 [shape = 's32[1]{0}', space=sflag, size = 0x4, scoped, tag = 'scoped memory for tpu_custom_call.1']
    #allocation5 [shape = 'u8[4096]{0}', space=vmem, size = 0x1000, scoped, tag = 'output window, operand 0, single buffered']
    %6 = vsyncpa [#allocation3], 0
    %7 = vsyncpa [#allocation4], 0
    // Predicated region
    $region2: #{tpu_custom_call.1} parent=1 // pred_check
      _
    $region3: #{tpu_custom_call.1} parent=1 // pred_check_branch
      %9 = sbr.rel (0) target = $region5
    $region4: #{tpu_custom_call.1} parent=1 // pred_region
      %s11 = ssub.s32 128, 128
      %12 = vsyncadd [#allocation3], %s11
      %s14 = sshll.u32 [#allocation2], 4
      %s15 = int_to_ptr.vmem [resolvable:$true] %s14
      %17 = dma.hbm_to_vmem [thread:$0]  %s0, 128, %s15, [#allocation3]
    $region5: #{tpu_custom_call.1} parent=1 // pred_fallthru
      _
    // Predicated region
    $region6: #{tpu_custom_call.1} parent=1 // pred_check
      _
    $region7: #{tpu_custom_call.1} parent=1 // pred_check_branch
      %19 = sbr.rel (0) target = $region9
    $region8: #{tpu_custom_call.1} parent=1 // pred_region
      %20 = dma.done [#allocation3], 128
    $region9: #{tpu_custom_call.1} parent=1 // pred_fallthru
      _
    %v21 = vld [vmem:[#allocation2] sm:$0xff]
    %22 = vrot.lane.b32.xlu0 %v21, 1
    %v23 = vpop.permute.xlu0 %22
    %24 = vst [vmem:[#allocation5] sm:$0xff] %v23
    // Predicated region
    $region10: #{tpu_custom_call.1} parent=1 // pred_check
      _
    $region11: #{tpu_custom_call.1} parent=1 // pred_check_branch
      %26 = sbr.rel (0) target = $region13
    $region12: #{tpu_custom_call.1} parent=1 // pred_region
      %s28 = ssub.s32 128, 128
      %29 = vsyncadd [#allocation4], %s28
      %s31 = sshll.u32 [#allocation5], 4
      %s32 = int_to_ptr.vmem [resolvable:$true] %s31
      %34 = dma.vmem_to_hbm [thread:$0]  %s32, 128, %s1, [#allocation4]
    $region13: #{tpu_custom_call.1} parent=1 // pred_fallthru
      _
    // Predicated region
    $region14: #{tpu_custom_call.1} parent=1 // pred_check
      _
    $region15: #{tpu_custom_call.1} parent=1 // pred_check_branch
      %36 = sbr.rel (0) target = $region17
    $region16: #{tpu_custom_call.1} parent=1 // pred_region
      %37 = dma.done [#allocation4], 128
    $region17: #{tpu_custom_call.1} parent=1 // pred_fallthru
      _
    %38 = vsyncpa [#allocation3], 1
    %39 = vsyncpa [#allocation4], 1

// kernel: tpu_custom_call.1
$region0: #{tpu_custom_call.1}
  #allocation0 [shape = 'u32[]', space=smem, size = 0x4, offset = 0x4, fixed_abs, tag = 'smem constant byte address 0x4 - core index']
  #allocation1 [shape = 'u32[144,128]{1,0:T(1,128)}', space=vmem, size = 0x12000, scoped, tag = 'internal scratch']
  %s0 = inlined_call_operand.hbm [shape: f32[8,128], index: 0, kind: input, shape index: {}]
  %s1 = inlined_call_operand.hbm [shape: f32[8,128], index: 1, kind: output, shape index: {}]
  %s2 = sld [smem:[#allocation0]]
  $region18: #{tpu_custom_call.1} parent=0
    _
  %s4 = ssub.s32 1, %s2
  %s5 = scalar_select 0, %s4, %s2
  $region1: #{tpu_custom_call.1} parent=0
    #allocation2 [shape = 'u8[4096]{0}', space=vmem, size = 0x1000, scoped, tag = 'input window, operand 0, single buffered']
    #allocation3 [shape = 's32[1]{0}', space=sflag, size = 0x4, scoped, tag = 'scoped memory for tpu_custom_call.1']
    #allocation4 [shape = 's32[1]{0}', space=sflag, size = 0x4, scoped, tag = 'scoped memory for tpu_custom_call.1']
    #allocation5 [shape = 'u8[4096]{0}', space=vmem, size = 0x1000, scoped, tag = 'output window, operand 0, single buffered']
    %6 = vsyncpa [#allocation3], 0
    %7 = vsyncpa [#allocation4], 0
    // Predicated region
    $region2: #{tpu_custom_call.1} parent=1 // pred_check
      _
    $region3: #{tpu_custom_call.1} parent=1 // pred_check_branch
      %9 = sbr.rel (0) target = $region5
    $region4: #{tpu_custom_call.1} parent=1 // pred_region
      %s11 = ssub.s32 128, 128
      %12 = vsyncadd [#allocation3], %s11
      %s14 = sshll.u32 [#allocation2], 4
      %s15 = int_to_ptr.vmem [resolvable:$true] %s14
      %17 = dma.hbm_to_vmem [thread:$0]  %s0, 128, %s15, [#allocation3]
    $region5: #{tpu_custom_call.1} parent=1 // pred_fallthru
      _
    // Predicated region
    $region6: #{tpu_custom_call.1} parent=1 // pred_check
      _
    $region7: #{tpu_custom_call.1} parent=1 // pred_check_branch
      %19 = sbr.rel (0) target = $region9
    $region8: #{tpu_custom_call.1} parent=1 // pred_region
      %20 = dma.done [#allocation3], 128
    $region9: #{tpu_custom_call.1} parent=1 // pred_fallthru
      _
    %v21 = vld [vmem:[#allocation2] sm:$0xff]
    %22 = vrot.lane.b32.xlu0 %v21, 1
    %v23 = vpop.permute.xlu0 %22
    %24 = vst [vmem:[#allocation5] sm:$0xff] %v23
    // Predicated region
    $region10: #{tpu_custom_call.1} parent=1 // pred_check
      _
    $region11: #{tpu_custom_call.1} parent=1 // pred_check_branch
      %26 = sbr.rel (0) target = $region13
    $region12: #{tpu_custom_call.1} parent=1 // pred_region
      %s28 = ssub.s32 128, 128
      %29 = vsyncadd [#allocation4], %s28
      %s31 = sshll.u32 [#allocation5], 4
      %s32 = int_to_ptr.vmem [resolvable:$true] %s31
      %34 = dma.vmem_to_hbm [thread:$0]  %s32, 128, %s1, [#allocation4]
    $region13: #{tpu_custom_call.1} parent=1 // pred_fallthru
      _
    // Predicated region
    $region14: #{tpu_custom_call.1} parent=1 // pred_check
      _
    $region15: #{tpu_custom_call.1} parent=1 // pred_check_branch
      %36 = sbr.rel (0) target = $region17
    $region16: #{tpu_custom_call.1} parent=1 // pred_region
      %37 = dma.done [#allocation4], 128
    $region17: #{tpu_custom_call.1} parent=1 // pred_fallthru
      _
    %38 = vsyncpa [#allocation3], 1
    %39 = vsyncpa [#allocation4], 1

</llo_original>
